<compile_context>
chip_gen: v7x
topology: tpu7x:2x2x1
jax: 0.10.0
libtpu: 0.0.40
codegen_flags: <defaults>
</compile_context>

<pallas_src>
import jax
import jax.numpy as jnp
from jax.experimental import pallas as pl
from jax.experimental.pallas import tpu as pltpu

_LANES = 128


def mlp_critic_kernel(x_ref, w1t_ref, b1_ref, w2t_ref, b2_ref, w3_ref, b3_ref,
                      o_ref):
    # Layer 1: (h1, obs_dim) contracted against (TB, obs_dim) over obs_dim
    # -> (h1, TB); batch lands on the lane axis for everything downstream.
    h1t = jnp.tanh(
        jax.lax.dot_general(
            w1t_ref[...], x_ref[...],
            dimension_numbers=(((1,), (1,)), ((), ())),
            preferred_element_type=jnp.float32,
        )
        + b1_ref[...]          # (h1, 1) bias, broadcast along lanes
    )
    # Layer 2: (h2, h1) @ (h1, TB) -> (h2, TB); lane-dense matmul + tanh.
    h2t = jnp.tanh(
        jnp.dot(w2t_ref[...], h1t, preferred_element_type=jnp.float32)
        + b2_ref[...]
    )
    # Output layer: (1, h2) @ (h2, TB) -> (1, TB); lane-dense (unmasked) store.
    v = jnp.dot(w3_ref[...], h2t, preferred_element_type=jnp.float32)
    o_ref[...] = (v + b3_ref[...]).astype(o_ref.dtype)


def _max_tile_rows(obs_dim, h1, h2, vmem_limit_bytes):
    """Largest batch tile (rows) whose resident VMEM fits under the limit."""
    obs_row = pl.cdiv(obs_dim, _LANES) * _LANES * 4   # lane-padded f32 obs row
    per_row = (
        2 * obs_row          # obs input block, double-buffered by the pipeline
        + obs_row            # headroom for a relayout copy of the obs tile
        + 4 * (h1 + h2)      # (h1, TB) / (h2, TB) lane-dense f32 temps
        + 2 * 8 * 4          # (1, TB) output block padded to 8 sublanes, 2 bufs
    )
    per_row *= 2             # slack for compiler temps / spills
    return max((vmem_limit_bytes // per_row) // _LANES * _LANES, _LANES)


def _choose_batch_tile(B, max_tb):
    """Return (tb, padded_b). Avoids padding obs whenever possible."""
    if B <= max_tb and (B % _LANES != 0 or B <= _LANES):
        # Small or ragged batch in one full-extent block: block == array dims
        # waives the (8,128) divisibility rule -> no padding, no HBM copy.
        return B, B
    if B % _LANES == 0:
        # Largest lane-multiple tile that divides B exactly, keeping >=2 tiles
        # so the "parallel" batch axis can split across v7x's two TensorCores.
        for cand in range(max_tb, _LANES - 1, -_LANES):
            if B % cand == 0 and B // cand >= 2:
                return cand, B
        return _LANES, B
    # Large ragged batch: pad up to a lane multiple.
    # TODO(synk): replace this whole-array jnp.pad with an in-kernel tail mask
    # (or a small second pallas_call) to avoid the extra HBM copy of obs.
    padded_b = pl.cdiv(B, _LANES) * _LANES
    for cand in range(max_tb, _LANES - 1, -_LANES):
        if padded_b % cand == 0:
            return cand, padded_b
    return _LANES, padded_b


def mlp_critic_forward(obs, params, *, block_rows=4096,
                       vmem_limit_bytes=32 * 1024 * 1024):
    """obs: (B, obs_dim) f32. params: dict of w1,b1,w2,b2,w3,b3. Returns (B,)."""
    w1, w2, w3 = params["w1"], params["w2"], params["w3"]
    b1, b2, b3 = params["b1"], params["b2"], params["b3"]

    B, obs_dim = obs.shape
    h1 = w1.shape[1]
    h2 = w2.shape[1]

    # Kernel works in transposed (hidden, TB) layout -> pre-shape the (tiny)
    # parameters once in the wrapper: weights as (out, in), biases as (out, 1).
    w1t = w1.T                       # (h1, obs_dim)
    w2t = w2.T                       # (h2, h1)
    w3r = w3.reshape(1, h2)          # (1, h2)
    b1c = b1.reshape(h1, 1)
    b2c = b2.reshape(h2, 1)
    b3c = b3.reshape(1, 1)

    max_tb = min(max(block_rows // _LANES * _LANES, _LANES),
                 _max_tile_rows(obs_dim, h1, h2, vmem_limit_bytes))
    tb, padded_b = _choose_batch_tile(B, max_tb)
    if padded_b != B:
        obs = jnp.pad(obs, ((0, padded_b - B), (0, 0)))
    grid = (padded_b // tb,)

    # Advisory cost estimate so XLA schedules the custom call sensibly.
    flops = 2 * padded_b * (obs_dim * h1 + h1 * h2 + h2)
    transcendentals = padded_b * (h1 + h2)
    bytes_accessed = 4 * (
        padded_b * obs_dim          # obs read
        + padded_b                  # values written
        + obs_dim * h1 + h1         # layer-1 params
        + h1 * h2 + h2              # layer-2 params
        + h2 + 1                    # layer-3 params
    )

    pinned = lambda i: (0, 0)  # same block every step -> params stay resident
    out = pl.pallas_call(
        mlp_critic_kernel,
        out_shape=jax.ShapeDtypeStruct((1, padded_b), jnp.float32),
        grid=grid,
        in_specs=[
            pl.BlockSpec((tb, obs_dim), lambda i: (i, 0)),   # obs: batch-tiled
            pl.BlockSpec(w1t.shape, pinned),
            pl.BlockSpec(b1c.shape, pinned),
            pl.BlockSpec(w2t.shape, pinned),
            pl.BlockSpec(b2c.shape, pinned),
            pl.BlockSpec(w3r.shape, pinned),
            pl.BlockSpec(b3c.shape, pinned),
        ],
        out_specs=pl.BlockSpec((1, tb), lambda i: (0, i)),   # lane-dense output
        compiler_params=pltpu.CompilerParams(
            dimension_semantics=("parallel",),  # shard batch tiles across TCs
            vmem_limit_bytes=vmem_limit_bytes,
        ),
        cost_estimate=pl.CostEstimate(
            flops=flops,
            transcendentals=transcendentals,
            bytes_accessed=bytes_accessed,
        ),
    )(obs, w1t, b1c, w2t, b2c, w3r, b3c)

    # (1, padded_B) lane-major values -> (B,), matching torch.squeeze(..., -1).
    return out[0, :B]


def init_params(key, obs_dim, hidden_sizes):
    """Deterministic synthetic init (PyTorch-Linear-like uniform bounds)."""
    sizes = [obs_dim] + list(hidden_sizes) + [1]
    params = {}
    for i, (fan_in, fan_out) in enumerate(zip(sizes[:-1], sizes[1:]), start=1):
        key, kw, kb = jax.random.split(key, 3)
        bound = 1.0 / jnp.sqrt(fan_in)
        # Stored as (in_features, out_features) for the x @ W convention.
        params[f"w{i}"] = jax.random.uniform(
            kw, (fan_in, fan_out), jnp.float32, -bound, bound
        )
        # Biases kept 2D (1, out_features); the wrapper reshapes as needed.
        params[f"b{i}"] = jax.random.uniform(
            kb, (1, fan_out), jnp.float32, -bound, bound
        )
    return params


def reference_forward(obs, params):
    hp = jax.lax.Precision.HIGHEST
    h = jnp.tanh(jnp.dot(obs, params["w1"], precision=hp) + params["b1"])
    h = jnp.tanh(jnp.dot(h, params["w2"], precision=hp) + params["b2"])
    v = jnp.dot(h, params["w3"], precision=hp) + params["b3"]
    return jnp.squeeze(v, -1)


if __name__ == "__main__":
    obs_dim = 16
    hidden_sizes = (32, 32)   # activation = Tanh between hidden layers
    batch = 8

    key = jax.random.PRNGKey(0)
    key, k_obs = jax.random.split(key)
    obs = jax.random.normal(k_obs, (batch, obs_dim), dtype=jnp.float32)
    params = init_params(key, obs_dim, hidden_sizes)

    values = mlp_critic_forward(obs, params)
    values = jax.block_until_ready(values)

    ref = reference_forward(obs, params)
    assert values.shape == (batch,)
    assert jnp.allclose(values, ref, atol=1e-4, rtol=1e-4), (values, ref)

    print("KERNEL_OK")
</pallas_src>

<mosaic_0001>
module attributes {stable_mosaic.version = 11 : i64} {
  func.func @mlp_critic_kernel(%arg0: i32, %arg1: memref<8x16xf32, #tpu.memory_space<vmem>>, %arg2: memref<32x16xf32, #tpu.memory_space<vmem>>, %arg3: memref<32x1xf32, #tpu.memory_space<vmem>>, %arg4: memref<32x32xf32, #tpu.memory_space<vmem>>, %arg5: memref<32x1xf32, #tpu.memory_space<vmem>>, %arg6: memref<1x32xf32, #tpu.memory_space<vmem>>, %arg7: memref<1x1xf32, #tpu.memory_space<vmem>>, %arg8: memref<1x8xf32, #tpu.memory_space<vmem>>) attributes {dimension_semantics = [#tpu.dimension_semantics<parallel>], iteration_bounds = array<i64: 1>, scalar_prefetch = 0 : i64, scratch_operands = 0 : i64, tpu.core_type = #tpu.core_type<tc>, window_params = [{transform_indices = @transform_0, window_bounds = array<i64: 8, 16>}, {pipeline_mode = #tpu.pipeline_mode<synchronous>, transform_indices = @transform_1, window_bounds = array<i64: 32, 16>}, {pipeline_mode = #tpu.pipeline_mode<synchronous>, transform_indices = @transform_2, window_bounds = array<i64: 32, 1>}, {pipeline_mode = #tpu.pipeline_mode<synchronous>, transform_indices = @transform_3, window_bounds = array<i64: 32, 32>}, {pipeline_mode = #tpu.pipeline_mode<synchronous>, transform_indices = @transform_4, window_bounds = array<i64: 32, 1>}, {pipeline_mode = #tpu.pipeline_mode<synchronous>, transform_indices = @transform_5, window_bounds = array<i64: 1, 32>}, {pipeline_mode = #tpu.pipeline_mode<synchronous>, transform_indices = @transform_6, window_bounds = array<i64: 1, 1>}, {transform_indices = @transform_7, window_bounds = array<i64: 1, 8>}]} {
    %c0 = arith.constant 0 : index
    %c0_0 = arith.constant 0 : index
    %0 = vector.load %arg2[%c0, %c0_0] : memref<32x16xf32, #tpu.memory_space<vmem>>, vector<32x16xf32>
    %c0_1 = arith.constant 0 : index
    %c0_2 = arith.constant 0 : index
    %1 = vector.load %arg1[%c0_1, %c0_2] : memref<8x16xf32, #tpu.memory_space<vmem>>, vector<8x16xf32>
    %cst = arith.constant dense<0.000000e+00> : vector<32x8xf32>
    %2 = tpu.matmul %0, %1, %cst {dimension_numbers = #tpu.dot_dimension_numbers<[1], [1], [0], [0], [0, 0, 1, 0], [], []>} : vector<32x16xf32>, vector<8x16xf32>, vector<32x8xf32> -> vector<32x8xf32>
    %c0_3 = arith.constant 0 : index
    %c0_4 = arith.constant 0 : index
    %3 = vector.load %arg3[%c0_3, %c0_4] : memref<32x1xf32, #tpu.memory_space<vmem>>, vector<32x1xf32>
    %4 = vector.broadcast %3 : vector<32x1xf32> to vector<32x8xf32>
    %5 = arith.addf %2, %4 : vector<32x8xf32>
    %6 = math.tanh %5 : vector<32x8xf32>
    %c0_5 = arith.constant 0 : index
    %c0_6 = arith.constant 0 : index
    %7 = vector.load %arg4[%c0_5, %c0_6] : memref<32x32xf32, #tpu.memory_space<vmem>>, vector<32x32xf32>
    %cst_7 = arith.constant dense<0.000000e+00> : vector<32x8xf32>
    %8 = tpu.matmul %7, %6, %cst_7 {dimension_numbers = #tpu.dot_dimension_numbers<[1], [0], [0], [1], [0, 0, 1, 1], [], []>} : vector<32x32xf32>, vector<32x8xf32>, vector<32x8xf32> -> vector<32x8xf32>
    %c0_8 = arith.constant 0 : index
    %c0_9 = arith.constant 0 : index
    %9 = vector.load %arg5[%c0_8, %c0_9] : memref<32x1xf32, #tpu.memory_space<vmem>>, vector<32x1xf32>
    %10 = vector.broadcast %9 : vector<32x1xf32> to vector<32x8xf32>
    %11 = arith.addf %8, %10 : vector<32x8xf32>
    %12 = math.tanh %11 : vector<32x8xf32>
    %c0_10 = arith.constant 0 : index
    %c0_11 = arith.constant 0 : index
    %13 = vector.load %arg6[%c0_10, %c0_11] : memref<1x32xf32, #tpu.memory_space<vmem>>, vector<1x32xf32>
    %cst_12 = arith.constant dense<0.000000e+00> : vector<1x8xf32>
    %14 = tpu.matmul %13, %12, %cst_12 {dimension_numbers = #tpu.dot_dimension_numbers<[1], [0], [0], [1], [0, 0, 1, 1], [], []>} : vector<1x32xf32>, vector<32x8xf32>, vector<1x8xf32> -> vector<1x8xf32>
    %c0_13 = arith.constant 0 : index
    %c0_14 = arith.constant 0 : index
    %15 = vector.load %arg7[%c0_13, %c0_14] : memref<1x1xf32, #tpu.memory_space<vmem>>, vector<1x1xf32>
    %16 = vector.broadcast %15 : vector<1x1xf32> to vector<1x8xf32>
    %17 = arith.addf %14, %16 : vector<1x8xf32>
    %c0_15 = arith.constant 0 : index
    %c0_16 = arith.constant 0 : index
    %18 = vector.load %arg8[%c0_15, %c0_16] : memref<1x8xf32, #tpu.memory_space<vmem>>, vector<1x8xf32>
    tpu.vector_store %arg8[%c0_15, %c0_16], %17 {strides = array<i32>} : memref<1x8xf32, #tpu.memory_space<vmem>>, vector<1x8xf32>,
    return
  }
  func.func @transform_0(%arg0: i32) -> (i32, i32) {
    %c0_i32 = arith.constant 0 : i32
    %c0_i32_0 = arith.constant 0 : i32
    return %arg0, %c0_i32 : i32, i32
  }
  func.func @transform_1(%arg0: i32) -> (i32, i32) {
    %c0_i32 = arith.constant 0 : i32
    %c0_i32_0 = arith.constant 0 : i32
    %c0_i32_1 = arith.constant 0 : i32
    return %c0_i32, %c0_i32_0 : i32, i32
  }
  func.func @transform_2(%arg0: i32) -> (i32, i32) {
    %c0_i32 = arith.constant 0 : i32
    %c0_i32_0 = arith.constant 0 : i32
    %c0_i32_1 = arith.constant 0 : i32
    return %c0_i32, %c0_i32_0 : i32, i32
  }
  func.func @transform_3(%arg0: i32) -> (i32, i32) {
    %c0_i32 = arith.constant 0 : i32
    %c0_i32_0 = arith.constant 0 : i32
    %c0_i32_1 = arith.constant 0 : i32
    return %c0_i32, %c0_i32_0 : i32, i32
  }
  func.func @transform_4(%arg0: i32) -> (i32, i32) {
    %c0_i32 = arith.constant 0 : i32
    %c0_i32_0 = arith.constant 0 : i32
    %c0_i32_1 = arith.constant 0 : i32
    return %c0_i32, %c0_i32_0 : i32, i32
  }
  func.func @transform_5(%arg0: i32) -> (i32, i32) {
    %c0_i32 = arith.constant 0 : i32
    %c0_i32_0 = arith.constant 0 : i32
    %c0_i32_1 = arith.constant 0 : i32
    return %c0_i32, %c0_i32_0 : i32, i32
  }
  func.func @transform_6(%arg0: i32) -> (i32, i32) {
    %c0_i32 = arith.constant 0 : i32
    %c0_i32_0 = arith.constant 0 : i32
    %c0_i32_1 = arith.constant 0 : i32
    return %c0_i32, %c0_i32_0 : i32, i32
  }
  func.func @transform_7(%arg0: i32) -> (i32, i32) {
    %c0_i32 = arith.constant 0 : i32
    %c0_i32_0 = arith.constant 0 : i32
    return %c0_i32, %arg0 : i32, i32
  }
}

</mosaic_0001>

<llo_original>
// kernel: tpu_custom_call.1
$region0: #{tpu_custom_call.1}
  #allocation0 [shape = 'u32[]', space=smem, size = 0x4, offset = 0x4, fixed_abs, tag = 'smem constant byte address 0x4 - core index']
  #allocation1 [shape = 'u32[144,128]{1,0:T(1,128)}', space=vmem, size = 0x12000, scoped, tag = 'internal scratch']
  #allocation2 [shape = 'f32[1,1]{1,0:T(1,128)S(1)}', space=vmem, size = 0x200, scoped, tag = 'scoped memory for tpu_custom_call.1']
  %s0 = inlined_call_operand.vmem [shape: f32[8,16], index: 0, kind: input, shape index: {}]
  %s1 = inlined_call_operand.vmem [shape: f32[32,16], index: 1, kind: input, shape index: {}]
  %s2 = inlined_call_operand.vmem [shape: f32[32,1], index: 2, kind: input, shape index: {}]
  %s3 = inlined_call_operand.vmem [shape: f32[32,32], index: 3, kind: input, shape index: {}]
  %s4 = inlined_call_operand.vmem [shape: f32[32,1], index: 4, kind: input, shape index: {}]
  %s5 = inlined_call_operand.vmem [shape: f32[1,32], index: 5, kind: input, shape index: {}]
  %s6 = inlined_call_operand.<no memory space> [shape: f32[1,1], index: 6, kind: input, shape index: {}]
  %s7 = inlined_call_operand.hbm [shape: f32[1,8], index: 7, kind: output, shape index: {}]
  %s8 = sld [smem:[#allocation0]]
  $region38: #{tpu_custom_call.1} parent=0
    _
  %s10 = ssub.s32 1, %s8
  %s11 = scalar_select 0, %s10, %s8
  %v12 = vstv %s6
  %13 = vst [vmem:[#allocation2] sm:$0x1] %v12
  $region1: #{tpu_custom_call.1} parent=0
    #allocation3 [shape = 'u8[512]{0}', space=vmem, size = 0x400, scoped, tag = 'output window, operand 0, single buffered']
    #allocation4 [shape = 's32[1]{0}', space=sflag, size = 0x4, scoped, tag = 'scoped memory for tpu_custom_call.1']
    %14 = vsyncpa [#allocation4], 0
    // Predicated region
    $region2: #{tpu_custom_call.1} parent=1 // pred_check
      _
    $region3: #{tpu_custom_call.1} parent=1 // pred_check_branch
      %16 = sbr.rel (0) target = $region5
    $region4: #{tpu_custom_call.1} parent=1 // pred_region
      _
    $region5: #{tpu_custom_call.1} parent=1 // pred_fallthru
      _
    // Predicated region
    $region6: #{tpu_custom_call.1} parent=1 // pred_check
      _
    $region7: #{tpu_custom_call.1} parent=1 // pred_check_branch
      %18 = sbr.rel (0) target = $region9
    $region8: #{tpu_custom_call.1} parent=1 // pred_region
      _
    $region9: #{tpu_custom_call.1} parent=1 // pred_fallthru
      _
    // Predicated region
    $region10: #{tpu_custom_call.1} parent=1 // pred_check
      _
    $region11: #{tpu_custom_call.1} parent=1 // pred_check_branch
      %20 = sbr.rel (0) target = $region13
    $region12: #{tpu_custom_call.1} parent=1 // pred_region
      _
    $region13: #{tpu_custom_call.1} parent=1 // pred_fallthru
      _
    // Predicated region
    $region14: #{tpu_custom_call.1} parent=1 // pred_check
      _
    $region15: #{tpu_custom_call.1} parent=1 // pred_check_branch
      %22 = sbr.rel (0) target = $region17
    $region16: #{tpu_custom_call.1} parent=1 // pred_region
      _
    $region17: #{tpu_custom_call.1} parent=1 // pred_fallthru
      _
    // Predicated region
    $region18: #{tpu_custom_call.1} parent=1 // pred_check
      _
    $region19: #{tpu_custom_call.1} parent=1 // pred_check_branch
      %24 = sbr.rel (0) target = $region21
    $region20: #{tpu_custom_call.1} parent=1 // pred_region
      _
    $region21: #{tpu_custom_call.1} parent=1 // pred_fallthru
      _
    // Predicated region
    $region22: #{tpu_custom_call.1} parent=1 // pred_check
      _
    $region23: #{tpu_custom_call.1} parent=1 // pred_check_branch
      %26 = sbr.rel (0) target = $region25
    $region24: #{tpu_custom_call.1} parent=1 // pred_region
      _
    $region25: #{tpu_custom_call.1} parent=1 // pred_fallthru
      _
    // Predicated region
    $region26: #{tpu_custom_call.1} parent=1 // pred_check
      _
    $region27: #{tpu_custom_call.1} parent=1 // pred_check_branch
      %28 = sbr.rel (0) target = $region29
    $region28: #{tpu_custom_call.1} parent=1 // pred_region
      _
    $region29: #{tpu_custom_call.1} parent=1 // pred_fallthru
      _
    %v29 = vld [vmem:[%s1] sm:$0xff]
    %v30 = vld [vmem:[%s1 + $0x8] sm:$0xff]
    %v31 = vld [vmem:[%s1 + $0x10] sm:$0xff]
    %v32 = vld [vmem:[%s1 + $0x18] sm:$0xff]
    %v33 = vld [vmem:[%s0] sm:$0xff]
    %v34 = vld [vmem:[%s2] sm:$0xff]
    %v35 = vld [vmem:[%s2 + $0x8] sm:$0xff]
    %v36 = vld [vmem:[%s2 + $0x10] sm:$0xff]
    %v37 = vld [vmem:[%s2 + $0x18] sm:$0xff]
    %39 = vset.pattern.permute.xlu0 0
    %40 = vperm.xlu0 %39, %v34
    %v41 = vpop.permute.xlu0 %40
    %44 = vset.pattern.permute.xlu0 0
    %45 = vperm.xlu0 %44, %v35
    %v46 = vpop.permute.xlu0 %45
    %49 = vset.pattern.permute.xlu0 0
    %50 = vperm.xlu0 %49, %v36
    %v51 = vpop.permute.xlu0 %50
    %54 = vset.pattern.permute.xlu0 0
    %55 = vperm.xlu0 %54, %v37
    %v56 = vpop.permute.xlu0 %55
    %vm58 = vcmask 130048
    %v60 = vsel %vm58, %v29, 0
    %v63 = vsel %vm58, %v30, 0
    %v66 = vsel %vm58, %v31, 0
    %v69 = vsel %vm58, %v32, 0
    %v72 = vsel %vm58, %v33, 0
    %74 = vmatprep.subr.mxu0 0.0
    %75 = vmatpush1.xpose.msra.mxu0 %v72
    %76 = vmatprep.subr.mxu0 0.0
    %77 = vmatpush1.xpose.msra.mxu0 0.0
    %78 = vmatprep.subr.mxu0 0.0
    %79 = vmatpush1.xpose.msra.mxu0 0.0
    %80 = vmatprep.subr.mxu0 0.0
    %81 = vmatpush1.xpose.msra.mxu0 0.0
    %82 = vmatprep.subr.mxu0 0.0
    %83 = vmatpush1.xpose.msra.mxu0 0.0
    %84 = vmatprep.subr.mxu0 0.0
    %85 = vmatpush1.xpose.msra.mxu0 0.0
    %86 = vmatprep.subr.mxu0 0.0
    %87 = vmatpush1.xpose.msra.mxu0 0.0
    %88 = vmatprep.subr.mxu0 0.0
    %89 = vmatpush1.xpose.msra.mxu0 0.0
    %90 = vmatprep.subr.mxu0 0.0
    %91 = vmatpush1.xpose.msra.mxu0 0.0
    %92 = vmatprep.subr.mxu0 0.0
    %93 = vmatpush1.xpose.msra.mxu0 0.0
    %94 = vmatprep.subr.mxu0 0.0
    %95 = vmatpush1.xpose.msra.mxu0 0.0
    %96 = vmatprep.subr.mxu0 0.0
    %97 = vmatpush1.xpose.msra.mxu0 0.0
    %98 = vmatprep.subr.mxu0 0.0
    %99 = vmatpush1.xpose.msra.mxu0 0.0
    %100 = vmatprep.subr.mxu0 0.0
    %101 = vmatpush1.xpose.msra.mxu0 0.0
    %102 = vmatprep.subr.mxu0 0.0
    %103 = vmatpush1.xpose.msra.mxu0 0.0
    %104 = vmatprep.subr.mxu0 0.0
    %105 = vmatpush1.xpose.msra.mxu0 0.0
    %106 = vmatprep.subr.mxu0 0.0
    %107 = vmatpush1.xpose.msra.mxu0 0.0
    %108 = vmatprep.subr.mxu0 0.0
    %109 = vmatpush1.xpose.msra.mxu0 0.0
    %110 = vmatprep.subr.mxu0 0.0
    %111 = vmatpush1.xpose.msra.mxu0 0.0
    %112 = vmatprep.subr.mxu0 0.0
    %113 = vmatpush1.xpose.msra.mxu0 0.0
    %114 = vmatprep.subr.mxu0 0.0
    %115 = vmatpush1.xpose.msra.mxu0 0.0
    %116 = vmatprep.subr.mxu0 0.0
    %117 = vmatpush1.xpose.msra.mxu0 0.0
    %118 = vmatprep.subr.mxu0 0.0
    %119 = vmatpush1.xpose.msra.mxu0 0.0
    %120 = vmatprep.subr.mxu0 0.0
    %121 = vmatpush1.xpose.msra.mxu0 0.0
    %122 = vmatprep.subr.mxu0 0.0
    %123 = vmatpush1.xpose.msra.mxu0 0.0
    %124 = vmatprep.subr.mxu0 0.0
    %125 = vmatpush1.xpose.msra.mxu0 0.0
    %126 = vmatprep.subr.mxu0 0.0
    %127 = vmatpush1.xpose.msra.mxu0 0.0
    %128 = vmatprep.subr.mxu0 0.0
    %129 = vmatpush1.xpose.msra.mxu0 0.0
    %130 = vmatprep.subr.mxu0 0.0
    %131 = vmatpush1.xpose.msra.mxu0 0.0
    %132 = vmatprep.subr.mxu0 0.0
    %133 = vmatpush1.xpose.msra.mxu0 0.0
    %134 = vmatprep.subr.mxu0 0.0
    %135 = vmatpush1.xpose.msra.mxu0 0.0
    %136 = vmatprep.subr.mxu0 0.0
    %137 = vmatpush1.xpose.msra.mxu0 0.0
    %138 = vmatprep.mubr.f32.mxu0 0.0
    %139 = vmatmul.mubr.f32.gmra.mrb[0].mxu0 %v60
    %v140 = vpop.f32.mrb[0].mxu0
    %v141 = vadd.f32 %v41, %v140
    %v142 = vpop.f32.mrb[0].mxu0
    %143 = vmatprep.mubr.f32.mxu0 0.0
    %144 = vmatmul.mubr.f32.gmra.mrb[0].mxu0 %v63
    %v145 = vpop.f32.mrb[0].mxu0
    %v146 = vadd.f32 %v46, %v145
    %v147 = vpop.f32.mrb[0].mxu0
    %148 = vmatprep.mubr.f32.mxu0 0.0
    %149 = vmatmul.mubr.f32.gmra.mrb[0].mxu0 %v66
    %v150 = vpop.f32.mrb[0].mxu0
    %v151 = vadd.f32 %v51, %v150
    %v152 = vpop.f32.mrb[0].mxu0
    %153 = vmatprep.mubr.f32.mxu0 0.0
    %154 = vmatmul.mubr.f32.gmra.mrb[0].mxu0 %v69
    %v155 = vpop.f32.mrb[0].mxu0
    %v156 = vadd.f32 %v56, %v155
    %v157 = vpop.f32.mrb[0].mxu0
    %158 = vdwg.mxu0
    %v159 = vtanh.pop %v141
    %v160 = vtanh.pop %v146
    %v161 = vtanh.pop %v151
    %v162 = vtanh.pop %v156
    %v163 = vld [vmem:[%s3] sm:$0xff]
    %v164 = vld [vmem:[%s3 + $0x8] sm:$0xff]
    %v165 = vld [vmem:[%s3 + $0x10] sm:$0xff]
    %v166 = vld [vmem:[%s3 + $0x18] sm:$0xff]
    %v167 = vld [vmem:[%s4] sm:$0xff]
    %v168 = vld [vmem:[%s4 + $0x8] sm:$0xff]
    %v169 = vld [vmem:[%s4 + $0x10] sm:$0xff]
    %v170 = vld [vmem:[%s4 + $0x18] sm:$0xff]
    %172 = vset.pattern.permute.xlu0 0
    %173 = vperm.xlu0 %172, %v167
    %v174 = vpop.permute.xlu0 %173
    %177 = vset.pattern.permute.xlu0 0
    %178 = vperm.xlu0 %177, %v168
    %v179 = vpop.permute.xlu0 %178
    %182 = vset.pattern.permute.xlu0 0
    %183 = vperm.xlu0 %182, %v169
    %v184 = vpop.permute.xlu0 %183
    %187 = vset.pattern.permute.xlu0 0
    %188 = vperm.xlu0 %187, %v170
    %v189 = vpop.permute.xlu0 %188
    %vm191 = vcmask 261120
    %v193 = vsel %vm191, %v163, 0
    %v196 = vsel %vm191, %v164, 0
    %v199 = vsel %vm191, %v165, 0
    %v202 = vsel %vm191, %v166, 0
    %204 = vmatprep.subr.mxu0 0.0
    %205 = vmatpush1.msra.mxu0 %v159
    %206 = vmatprep.subr.mxu0 0.0
    %207 = vmatpush1.msra.mxu0 %v160
    %208 = vmatprep.subr.mxu0 0.0
    %209 = vmatpush1.msra.mxu0 %v161
    %210 = vmatprep.subr.mxu0 0.0
    %211 = vmatpush1.msra.mxu0 %v162
    %212 = vmatprep.subr.mxu0 0.0
    %213 = vmatpush1.msra.mxu0 0.0
    %214 = vmatprep.subr.mxu0 0.0
    %215 = vmatpush1.msra.mxu0 0.0
    %216 = vmatprep.subr.mxu0 0.0
    %217 = vmatpush1.msra.mxu0 0.0
    %218 = vmatprep.subr.mxu0 0.0
    %219 = vmatpush1.msra.mxu0 0.0
    %220 = vmatprep.subr.mxu0 0.0
    %221 = vmatpush1.msra.mxu0 0.0
    %222 = vmatprep.subr.mxu0 0.0
    %223 = vmatpush1.msra.mxu0 0.0
    %224 = vmatprep.subr.mxu0 0.0
    %225 = vmatpush1.msra.mxu0 0.0
    %226 = vmatprep.subr.mxu0 0.0
    %227 = vmatpush1.msra.mxu0 0.0
    %228 = vmatprep.subr.mxu0 0.0
    %229 = vmatpush1.msra.mxu0 0.0
    %230 = vmatprep.subr.mxu0 0.0
    %231 = vmatpush1.msra.mxu0 0.0
    %232 = vmatprep.subr.mxu0 0.0
    %233 = vmatpush1.msra.mxu0 0.0
    %234 = vmatprep.subr.mxu0 0.0
    %235 = vmatpush1.msra.mxu0 0.0
    %236 = vmatprep.subr.mxu0 0.0
    %237 = vmatpush1.msra.mxu0 0.0
    %238 = vmatprep.subr.mxu0 0.0
    %239 = vmatpush1.msra.mxu0 0.0
    %240 = vmatprep.subr.mxu0 0.0
    %241 = vmatpush1.msra.mxu0 0.0
    %242 = vmatprep.subr.mxu0 0.0
    %243 = vmatpush1.msra.mxu0 0.0
    %244 = vmatprep.subr.mxu0 0.0
    %245 = vmatpush1.msra.mxu0 0.0
    %246 = vmatprep.subr.mxu0 0.0
    %247 = vmatpush1.msra.mxu0 0.0
    %248 = vmatprep.subr.mxu0 0.0
    %249 = vmatpush1.msra.mxu0 0.0
    %250 = vmatprep.subr.mxu0 0.0
    %251 = vmatpush1.msra.mxu0 0.0
    %252 = vmatprep.subr.mxu0 0.0
    %253 = vmatpush1.msra.mxu0 0.0
    %254 = vmatprep.subr.mxu0 0.0
    %255 = vmatpush1.msra.mxu0 0.0
    %256 = vmatprep.subr.mxu0 0.0
    %257 = vmatpush1.msra.mxu0 0.0
    %258 = vmatprep.subr.mxu0 0.0
    %259 = vmatpush1.msra.mxu0 0.0
    %260 = vmatprep.subr.mxu0 0.0
    %261 = vmatpush1.msra.mxu0 0.0
    %262 = vmatprep.subr.mxu0 0.0
    %263 = vmatpush1.msra.mxu0 0.0
    %264 = vmatprep.subr.mxu0 0.0
    %265 = vmatpush1.msra.mxu0 0.0
    %266 = vmatprep.subr.mxu0 0.0
    %267 = vmatpush1.msra.mxu0 0.0
    %268 = vmatprep.mubr.f32.mxu0 0.0
    %269 = vmatmul.mubr.f32.gmra.mrb[0].mxu0 %v193
    %v270 = vpop.f32.mrb[0].mxu0
    %v271 = vadd.f32 %v174, %v270
    %v272 = vpop.f32.mrb[0].mxu0
    %273 = vmatprep.mubr.f32.mxu0 0.0
    %274 = vmatmul.mubr.f32.gmra.mrb[0].mxu0 %v196
    %v275 = vpop.f32.mrb[0].mxu0
    %v276 = vadd.f32 %v179, %v275
    %v277 = vpop.f32.mrb[0].mxu0
    %278 = vmatprep.mubr.f32.mxu0 0.0
    %279 = vmatmul.mubr.f32.gmra.mrb[0].mxu0 %v199
    %v280 = vpop.f32.mrb[0].mxu0
    %v281 = vadd.f32 %v184, %v280
    %v282 = vpop.f32.mrb[0].mxu0
    %283 = vmatprep.mubr.f32.mxu0 0.0
    %284 = vmatmul.mubr.f32.gmra.mrb[0].mxu0 %v202
    %v285 = vpop.f32.mrb[0].mxu0
    %v286 = vadd.f32 %v189, %v285
    %v287 = vpop.f32.mrb[0].mxu0
    %288 = vdwg.mxu0
    %v289 = vtanh.pop %v271
    %v290 = vtanh.pop %v276
    %v291 = vtanh.pop %v281
    %v292 = vtanh.pop %v286
    %v293 = vld [vmem:[%s5] sm:$0x1]
    %v294 = vld [vmem:[#allocation2] sm:$0x1]
    %296 = vset.pattern.permute.xlu0 0
    %297 = vperm.xlu0 %296, %v294
    %v298 = vpop.permute.xlu0 %297
    %v300 = vlaneseq
    %v301 = vshrl.u32 %v300, 7
    %v302 = vsub.s32 0, %v301
    %v303 = vrot.slane %v298, %v302
    %v305 = vsel %vm191, %v293, 0
    %307 = vmatprep.subr.mxu0 0.0
    %308 = vmatpush1.msra.mxu0 %v289
    %309 = vmatprep.subr.mxu0 0.0
    %310 = vmatpush1.msra.mxu0 %v290
    %311 = vmatprep.subr.mxu0 0.0
    %312 = vmatpush1.msra.mxu0 %v291
    %313 = vmatprep.subr.mxu0 0.0
    %314 = vmatpush1.msra.mxu0 %v292
    %315 = vmatprep.subr.mxu0 0.0
    %316 = vmatpush1.msra.mxu0 0.0
    %317 = vmatprep.subr.mxu0 0.0
    %318 = vmatpush1.msra.mxu0 0.0
    %319 = vmatprep.subr.mxu0 0.0
    %320 = vmatpush1.msra.mxu0 0.0
    %321 = vmatprep.subr.mxu0 0.0
    %322 = vmatpush1.msra.mxu0 0.0
    %323 = vmatprep.subr.mxu0 0.0
    %324 = vmatpush1.msra.mxu0 0.0
    %325 = vmatprep.subr.mxu0 0.0
    %326 = vmatpush1.msra.mxu0 0.0
    %327 = vmatprep.subr.mxu0 0.0
    %328 = vmatpush1.msra.mxu0 0.0
    %329 = vmatprep.subr.mxu0 0.0
    %330 = vmatpush1.msra.mxu0 0.0
    %331 = vmatprep.subr.mxu0 0.0
    %332 = vmatpush1.msra.mxu0 0.0
    %333 = vmatprep.subr.mxu0 0.0
    %334 = vmatpush1.msra.mxu0 0.0
    %335 = vmatprep.subr.mxu0 0.0
    %336 = vmatpush1.msra.mxu0 0.0
    %337 = vmatprep.subr.mxu0 0.0
    %338 = vmatpush1.msra.mxu0 0.0
    %339 = vmatprep.subr.mxu0 0.0
    %340 = vmatpush1.msra.mxu0 0.0
    %341 = vmatprep.subr.mxu0 0.0
    %342 = vmatpush1.msra.mxu0 0.0
    %343 = vmatprep.subr.mxu0 0.0
    %344 = vmatpush1.msra.mxu0 0.0
    %345 = vmatprep.subr.mxu0 0.0
    %346 = vmatpush1.msra.mxu0 0.0
    %347 = vmatprep.subr.mxu0 0.0
    %348 = vmatpush1.msra.mxu0 0.0
    %349 = vmatprep.subr.mxu0 0.0
    %350 = vmatpush1.msra.mxu0 0.0
    %351 = vmatprep.subr.mxu0 0.0
    %352 = vmatpush1.msra.mxu0 0.0
    %353 = vmatprep.subr.mxu0 0.0
    %354 = vmatpush1.msra.mxu0 0.0
    %355 = vmatprep.subr.mxu0 0.0
    %356 = vmatpush1.msra.mxu0 0.0
    %357 = vmatprep.subr.mxu0 0.0
    %358 = vmatpush1.msra.mxu0 0.0
    %359 = vmatprep.subr.mxu0 0.0
    %360 = vmatpush1.msra.mxu0 0.0
    %361 = vmatprep.subr.mxu0 0.0
    %362 = vmatpush1.msra.mxu0 0.0
    %363 = vmatprep.subr.mxu0 0.0
    %364 = vmatpush1.msra.mxu0 0.0
    %365 = vmatprep.subr.mxu0 0.0
    %366 = vmatpush1.msra.mxu0 0.0
    %367 = vmatprep.subr.mxu0 0.0
    %368 = vmatpush1.msra.mxu0 0.0
    %369 = vmatprep.subr.mxu0 0.0
    %370 = vmatpush1.msra.mxu0 0.0
    %371 = vmatprep.mubr.f32.mxu0 0.0
    %372 = vmatmul.mubr.f32.gmra.mrb[0].mxu0 %v305
    %v373 = vpop.f32.mrb[0].mxu0
    %v374 = vadd.f32 %v303, %v373
    %v375 = vpop.f32.mrb[0].mxu0
    %376 = vdwg.mxu0
    %vm377 = vcmask 57344
    %378 = vst.msk [vmem:[#allocation3] sm:$0x1] %vm377, %v374
    // Predicated region
    $region30: #{tpu_custom_call.1} parent=1 // pred_check
      _
    $region31: #{tpu_custom_call.1} parent=1 // pred_check_branch
      %380 = sbr.rel (0) target = $region33
    $region32: #{tpu_custom_call.1} parent=1 // pred_region
      %s382 = ssub.s32 16, 16
      %383 = vsyncadd [#allocation4], %s382
      %s385 = sshll.u32 [#allocation3], 4
      %s386 = int_to_ptr.vmem [resolvable:$true] %s385
      %388 = dma.vmem_to_hbm [thread:$0]  %s386, 16, %s7, [#allocation4]
    $region33: #{tpu_custom_call.1} parent=1 // pred_fallthru
      _
    // Predicated region
    $region34: #{tpu_custom_call.1} parent=1 // pred_check
      _
    $region35: #{tpu_custom_call.1} parent=1 // pred_check_branch
      %390 = sbr.rel (0) target = $region37
    $region36: #{tpu_custom_call.1} parent=1 // pred_region
      %391 = dma.done [#allocation4], 16
    $region37: #{tpu_custom_call.1} parent=1 // pred_fallthru
      _
    %392 = vsyncpa [#allocation4], 1

</llo_original>
